<compile_context>
chip_gen: v7x
topology: tpu7x:2x2x1
jax: 0.10.0
libtpu: 0.0.40
codegen_flags: <defaults>
</compile_context>

<pallas_src>
import jax
import jax.numpy as jnp
from jax.experimental import pallas as pl
from jax.experimental.pallas import tpu as pltpu


LANES = 128


def _round_up(x, m):
    return ((x + m - 1) // m) * m


def linear_sigmoid_kernel(x_ref, params_ref, o_ref):
    # x_ref:      (3, TILE_ROWS, 128) VMEM  -- feature-major, batch lane-dense
    # params_ref: (4,) SMEM = [w0, w1, w2, b]
    # o_ref:      (TILE_ROWS, 128) VMEM
    w0 = params_ref[0]
    w1 = params_ref[1]
    w2 = params_ref[2]
    b = params_ref[3]
    # VPU dot product over K=3 on fully dense (TILE_ROWS, 128) vregs.
    z = x_ref[0] * w0 + x_ref[1] * w1 + x_ref[2] * w2 + b
    # exp / reciprocal lower to the EUP slot (idle here).
    o_ref[...] = jax.nn.sigmoid(z).astype(o_ref.dtype)


def model_forward(x, weight, bias, tile_rows=None):
    """x: (N, 3) f32, weight: (1, 3) f32, bias: (1,) f32 -> (N, 1) f32."""
    n, f = x.shape
    assert f == 3, "Model is nn.Linear(3, 1)"

    # Four scalars [w0, w1, w2, b] travel through SMEM.
    params = jnp.concatenate(
        [weight.reshape(-1).astype(jnp.float32),
         bias.reshape(-1).astype(jnp.float32)]
    )  # (4,)

    # Lane-dense layout: batch dim maps onto the 128-lane axis.
    n_pad = _round_up(n, LANES)
    rows = n_pad // LANES
    xt = jnp.transpose(x.astype(jnp.float32))          # (3, N)
    if n_pad != n:                                      # pad at most 127 rows
        xt = jnp.pad(xt, ((0, 0), (0, n_pad - n)))
    x3 = xt.reshape(f, rows, LANES)                     # (3, rows, 128)

    # Tile selection: ~131K batch rows per grid step (1024 x 128).  Double-
    # buffered in+out is ~4 MiB -> fits the 16 MiB default scoped VMEM on v5e
    # and leaves ample headroom on v6e/v7x.
    if tile_rows is None:
        tile_rows = 1024
    # Keep >= 2 grid steps when there is enough work (v7x has 2 TCs/chip).
    if rows >= 16:
        tile_rows = min(tile_rows, _round_up(pl.cdiv(rows, 2), 8))
    if tile_rows >= rows:
        tile_rows = rows                                # full dim, no constraint
    else:
        tile_rows = max(8, _round_up(tile_rows, 8))     # sublane multiple of 8

    grid = (pl.cdiv(rows, tile_rows),)

    out = pl.pallas_call(
        linear_sigmoid_kernel,
        out_shape=jax.ShapeDtypeStruct((rows, LANES), jnp.float32),
        grid=grid,
        in_specs=[
            pl.BlockSpec((f, tile_rows, LANES), lambda i: (0, i, 0)),
            pl.BlockSpec(memory_space=pltpu.MemorySpace.SMEM),
        ],
        out_specs=pl.BlockSpec((tile_rows, LANES), lambda i: (i, 0)),
        compiler_params=pltpu.CompilerParams(
            dimension_semantics=("parallel",)),
        cost_estimate=pl.CostEstimate(
            flops=7 * n_pad,
            transcendentals=n_pad,
            bytes_accessed=16 * n_pad),
    )(x3, params)

    # (rows, 128) -> flat batch order -> (N, 1)
    return out.reshape(-1)[:n].reshape(n, 1)


if __name__ == "__main__":
    key = jax.random.PRNGKey(0)
    kx, kw, kb = jax.random.split(key, 3)

    # Synthetic stand-in for the csv columns [Height_cm, Weight_kg, Income_USD]
    N, F = 8, 3
    x = jax.random.normal(kx, (N, F), dtype=jnp.float32)

    # nn.Linear(3, 1)-shaped parameters (uniform in +-1/sqrt(3), mimicking
    # PyTorch's default init bound).
    bound = 1.0 / jnp.sqrt(jnp.float32(F))
    weight = jax.random.uniform(kw, (1, F), minval=-bound, maxval=bound,
                                dtype=jnp.float32)
    bias = jax.random.uniform(kb, (1,), minval=-bound, maxval=bound,
                              dtype=jnp.float32)

    out = model_forward(x, weight, bias)
    jax.block_until_ready(out)
    ref = jax.nn.sigmoid(x @ weight.T + bias)
    assert out.shape == (N, 1)
    assert jnp.allclose(out, ref, atol=1e-5, rtol=1e-5)

    # Tail path: N not a multiple of 128 (lane padding + slice-back).
    N2 = 13
    x2 = jax.random.normal(kx, (N2, F), dtype=jnp.float32)
    out2 = model_forward(x2, weight, bias)
    jax.block_until_ready(out2)
    ref2 = jax.nn.sigmoid(x2 @ weight.T + bias)
    assert out2.shape == (N2, 1)
    assert jnp.allclose(out2, ref2, atol=1e-5, rtol=1e-5)

    # Non-divisible grid path: rows=10 with an explicit 8-row tile -> 2 grid
    # steps with a masked boundary block on the output.
    N3 = 1200
    x3 = jax.random.normal(kx, (N3, F), dtype=jnp.float32)
    out3 = model_forward(x3, weight, bias, tile_rows=8)
    jax.block_until_ready(out3)
    ref3 = jax.nn.sigmoid(x3 @ weight.T + bias)
    assert out3.shape == (N3, 1)
    assert jnp.allclose(out3, ref3, atol=1e-5, rtol=1e-5)

    print("KERNEL_OK")
</pallas_src>

<mosaic_0001>
module attributes {stable_mosaic.version = 11 : i64} {
  func.func @linear_sigmoid_kernel(%arg0: i32, %arg1: memref<3x1x128xf32, #tpu.memory_space<vmem>>, %arg2: memref<4xf32, #tpu.memory_space<smem>>, %arg3: memref<1x128xf32, #tpu.memory_space<vmem>>) attributes {dimension_semantics = [#tpu.dimension_semantics<parallel>], iteration_bounds = array<i64: 1>, scalar_prefetch = 0 : i64, scratch_operands = 0 : i64, tpu.core_type = #tpu.core_type<tc>, window_params = [{transform_indices = @transform_0, window_bounds = array<i64: 3, 1, 128>}, {transform_indices = @transform_1, window_bounds = array<i64: 4>}, {transform_indices = @transform_2, window_bounds = array<i64: 1, 128>}]} {
    %c0 = arith.constant 0 : index
    %0 = memref.load %arg2[%c0] : memref<4xf32, #tpu.memory_space<smem>>
    %c1 = arith.constant 1 : index
    %1 = memref.load %arg2[%c1] : memref<4xf32, #tpu.memory_space<smem>>
    %c2 = arith.constant 2 : index
    %2 = memref.load %arg2[%c2] : memref<4xf32, #tpu.memory_space<smem>>
    %c3 = arith.constant 3 : index
    %3 = memref.load %arg2[%c3] : memref<4xf32, #tpu.memory_space<smem>>
    %c0_0 = arith.constant 0 : index
    %c0_1 = arith.constant 0 : index
    %c0_2 = arith.constant 0 : index
    %4 = vector.load %arg1[%c0_0, %c0_1, %c0_2] : memref<3x1x128xf32, #tpu.memory_space<vmem>>, vector<1x1x128xf32>
    %5 = vector.shape_cast %4 : vector<1x1x128xf32> to vector<1x128xf32>
    %6 = vector.broadcast %0 : f32 to vector<1x128xf32>
    %7 = arith.mulf %5, %6 : vector<1x128xf32>
    %c1_3 = arith.constant 1 : index
    %c0_4 = arith.constant 0 : index
    %c0_5 = arith.constant 0 : index
    %8 = vector.load %arg1[%c1_3, %c0_4, %c0_5] : memref<3x1x128xf32, #tpu.memory_space<vmem>>, vector<1x1x128xf32>
    %9 = vector.shape_cast %8 : vector<1x1x128xf32> to vector<1x128xf32>
    %10 = vector.broadcast %1 : f32 to vector<1x128xf32>
    %11 = arith.mulf %9, %10 : vector<1x128xf32>
    %12 = arith.addf %7, %11 : vector<1x128xf32>
    %c2_6 = arith.constant 2 : index
    %c0_7 = arith.constant 0 : index
    %c0_8 = arith.constant 0 : index
    %13 = vector.load %arg1[%c2_6, %c0_7, %c0_8] : memref<3x1x128xf32, #tpu.memory_space<vmem>>, vector<1x1x128xf32>
    %14 = vector.shape_cast %13 : vector<1x1x128xf32> to vector<1x128xf32>
    %15 = vector.broadcast %2 : f32 to vector<1x128xf32>
    %16 = arith.mulf %14, %15 : vector<1x128xf32>
    %17 = arith.addf %12, %16 : vector<1x128xf32>
    %18 = vector.broadcast %3 : f32 to vector<1x128xf32>
    %19 = arith.addf %17, %18 : vector<1x128xf32>
    %20 = arith.negf %19 : vector<1x128xf32>
    %21 = math.exp %20 : vector<1x128xf32>
    %cst = arith.constant 1.000000e+00 : f32
    %22 = vector.broadcast %cst : f32 to vector<1x128xf32>
    %23 = arith.addf %22, %21 : vector<1x128xf32>
    %24 = arith.divf %22, %23 : vector<1x128xf32>
    %c0_9 = arith.constant 0 : index
    %c0_10 = arith.constant 0 : index
    %25 = vector.load %arg3[%c0_9, %c0_10] : memref<1x128xf32, #tpu.memory_space<vmem>>, vector<1x128xf32>
    tpu.vector_store %arg3[%c0_9, %c0_10], %24 {strides = array<i32>} : memref<1x128xf32, #tpu.memory_space<vmem>>, vector<1x128xf32>,
    return
  }
  func.func @transform_0(%arg0: i32) -> (i32, i32, i32) {
    %c0_i32 = arith.constant 0 : i32
    %c0_i32_0 = arith.constant 0 : i32
    %c0_i32_1 = arith.constant 0 : i32
    return %c0_i32, %arg0, %c0_i32_0 : i32, i32, i32
  }
  func.func @transform_1(%arg0: i32) -> i32 {
    %c0_i32 = arith.constant 0 : i32
    %c0_i32_0 = arith.constant 0 : i32
    return %c0_i32 : i32
  }
  func.func @transform_2(%arg0: i32) -> (i32, i32) {
    %c0_i32 = arith.constant 0 : i32
    %c0_i32_0 = arith.constant 0 : i32
    return %arg0, %c0_i32 : i32, i32
  }
}

</mosaic_0001>

<llo_original>
// kernel: tpu_custom_call.1
$region0: #{tpu_custom_call.1}
  #allocation0 [shape = 'u32[]', space=smem, size = 0x4, offset = 0x4, fixed_abs, tag = 'smem constant byte address 0x4 - core index']
  #allocation1 [shape = 'u32[144,128]{1,0:T(1,128)}', space=vmem, size = 0x12000, scoped, tag = 'internal scratch']
  %s0 = inlined_call_operand.hbm [shape: f32[3,1,128], index: 0, kind: input, shape index: {}]
  %s1 = inlined_call_operand.vmem [shape: f32[4], index: 1, kind: input, shape index: {}]
  %s2 = inlined_call_operand.hbm [shape: f32[1,128], index: 2, kind: output, shape index: {}]
  %s3 = sld [smem:[#allocation0]]
  $region26: #{tpu_custom_call.1} parent=0
    _
  %s5 = ssub.s32 1, %s3
  %s6 = scalar_select 0, %s5, %s3
  $region1: #{tpu_custom_call.1} parent=0
    #allocation2 [shape = 'u8[1536]{0}', space=vmem, size = 0x800, scoped, tag = 'input window, operand 0, single buffered']
    #allocation3 [shape = 's32[1]{0}', space=sflag, size = 0x4, scoped, tag = 'scoped memory for tpu_custom_call.1']
    #allocation4 [shape = 's32[1]{0}', space=sflag, size = 0x4, scoped, tag = 'scoped memory for tpu_custom_call.1']
    #allocation5 [shape = 's32[1]{0}', space=sflag, size = 0x4, scoped, tag = 'scoped memory for tpu_custom_call.1']
    #allocation6 [shape = 'u8[512]{0}', space=smem, size = 0x200, scoped, tag = 'input window, operand 1, single buffered']
    #allocation7 [shape = 'u8[512]{0}', space=vmem, size = 0x400, scoped, tag = 'output window, operand 0, single buffered']
    %7 = vsyncpa [#allocation3], 0
    %8 = vsyncpa [#allocation5], 0
    %9 = vsyncpa [#allocation4], 0
    // Predicated region
    $region2: #{tpu_custom_call.1} parent=1 // pred_check
      _
    $region3: #{tpu_custom_call.1} parent=1 // pred_check_branch
      %11 = sbr.rel (0) target = $region5
    $region4: #{tpu_custom_call.1} parent=1 // pred_region
      %s13 = ssub.s32 48, 48
      %14 = vsyncadd [#allocation3], %s13
      %s15 = sshll.u32 [#allocation2], 4
      %s16 = int_to_ptr.vmem [resolvable:$true] %s15
      %21 = dma.hbm_to_vmem [thread:$0]  %s0, 48, %s16, [#allocation3], 16, 16, 1
    $region5: #{tpu_custom_call.1} parent=1 // pred_fallthru
      _
    // Predicated region
    $region6: #{tpu_custom_call.1} parent=1 // pred_check
      _
    $region7: #{tpu_custom_call.1} parent=1 // pred_check_branch
      %23 = sbr.rel (0) target = $region9
    $region8: #{tpu_custom_call.1} parent=1 // pred_region
      %s25 = ssub.s32 16, 16
      %26 = vsyncadd [#allocation5], %s25
      %s28 = sshll.u32 %s1, 4
      %s29 = int_to_ptr.vmem [resolvable:$true] %s28
      %31 = dma.vmem_to_smem %s29, 16, [#allocation6], [#allocation5]
    $region9: #{tpu_custom_call.1} parent=1 // pred_fallthru
      _
    // Predicated region
    $region10: #{tpu_custom_call.1} parent=1 // pred_check
      _
    $region11: #{tpu_custom_call.1} parent=1 // pred_check_branch
      %33 = sbr.rel (0) target = $region13
    $region12: #{tpu_custom_call.1} parent=1 // pred_region
      %34 = dma.done [#allocation3], 48
    $region13: #{tpu_custom_call.1} parent=1 // pred_fallthru
      _
    // Predicated region
    $region14: #{tpu_custom_call.1} parent=1 // pred_check
      _
    $region15: #{tpu_custom_call.1} parent=1 // pred_check_branch
      %36 = sbr.rel (0) target = $region17
    $region16: #{tpu_custom_call.1} parent=1 // pred_region
      %37 = dma.done [#allocation5], 16
    $region17: #{tpu_custom_call.1} parent=1 // pred_fallthru
      _
    %38 = sfence
    %s39 = sld [smem:[#allocation6]]
    %s40 = sld [smem:[#allocation6 + $0x1]]
    %s41 = sld [smem:[#allocation6 + $0x2]]
    %s42 = sld [smem:[#allocation6 + $0x3]]
    %v43 = vld [vmem:[#allocation2] sm:$0x1]
    %v44 = vstv %s39
    %v45 = vmul.f32 %v43, %v44
    %s46 = scalar_lea.vmem [#allocation2], 1
    %v47 = vld [vmem:[%s46] sm:$0x1]
    %v48 = vstv %s40
    %v49 = vmul.f32 %v47, %v48
    %v50 = vadd.f32 %v45, %v49
    %s51 = scalar_lea.vmem [#allocation2], 2
    %v52 = vld [vmem:[%s51] sm:$0x1]
    %v53 = vstv %s41
    %v54 = vmul.f32 %v52, %v53
    %v55 = vadd.f32 %v50, %v54
    %v56 = vstv %s42
    %v57 = vadd.f32 %v55, %v56
    %v58 = vxor.u32 %v57, 2147483648
    %v59 = vmul.f32 %v58, 1.442695
    %v60 = vpow.pop %v59
    %v61 = vadd.f32 %v60, 1.0
    %v62 = vrcp.pop %v61
    %v63 = vmul.f32 1.0, %v62
    %64 = vst [vmem:[#allocation7] sm:$0x1] %v63
    // Predicated region
    $region18: #{tpu_custom_call.1} parent=1 // pred_check
      _
    $region19: #{tpu_custom_call.1} parent=1 // pred_check_branch
      %66 = sbr.rel (0) target = $region21
    $region20: #{tpu_custom_call.1} parent=1 // pred_region
      %s68 = ssub.s32 16, 16
      %69 = vsyncadd [#allocation4], %s68
      %s71 = sshll.u32 [#allocation7], 4
      %s72 = int_to_ptr.vmem [resolvable:$true] %s71
      %74 = dma.vmem_to_hbm [thread:$0]  %s72, 16, %s2, [#allocation4]
    $region21: #{tpu_custom_call.1} parent=1 // pred_fallthru
      _
    // Predicated region
    $region22: #{tpu_custom_call.1} parent=1 // pred_check
      _
    $region23: #{tpu_custom_call.1} parent=1 // pred_check_branch
      %76 = sbr.rel (0) target = $region25
    $region24: #{tpu_custom_call.1} parent=1 // pred_region
      %77 = dma.done [#allocation4], 16
    $region25: #{tpu_custom_call.1} parent=1 // pred_fallthru
      _
    %78 = vsyncpa [#allocation3], 1
    %79 = vsyncpa [#allocation4], 1
    %80 = vsyncpa [#allocation5], 1

</llo_original>
